<compile_context>
chip_gen: v6e
topology: v6e:2x2x1
jax: 0.10.0
libtpu: 0.0.40
codegen_flags: <defaults>
</compile_context>

<pallas_src>
import math

import jax
import jax.numpy as jnp
from jax.experimental import pallas as pl
from jax.experimental.pallas import tpu as pltpu

LANES = 128
SUBLANES = 8
MAX_ACC_ROWS = 64            # 8 f32 vregs -> 8 independent VPU accumulate chains
MAX_BLOCK_BYTES = 1 << 20    # ~1 MiB per input per pipeline buffer (85%+ roofline)


def _round_up(x, m):
    return ((x + m - 1) // m) * m


def _tensorcores_per_chip():
    """2 TensorCores per chip on v7x, 1 on earlier generations."""
    try:
        kind = jax.devices()[0].device_kind.lower()
    except Exception:
        return 1
    return 2 if ("v7" in kind or "7x" in kind) else 1


def _make_rse_kernel(block_rows, acc_rows, steps_per_par, total_rows, needs_mask):
    def kernel(x_ref, y_ref, out_ref):
        i = pl.program_id(1)

        @pl.when(i == 0)
        def _():
            out_ref[...] = jnp.zeros_like(out_ref)

        # Blocks are streamed in their native dtype; the upcast hides under DMA.
        d = x_ref[...].astype(jnp.float32) - y_ref[...].astype(jnp.float32)

        if needs_mask:
            # Zero rows past the real data: the ragged last block and any
            # phantom block of an uneven megacore split read stale VMEM
            # (possibly NaN/Inf), so select (not multiply) before squaring.
            start_row = (pl.program_id(0) * steps_per_par + i) * block_rows
            rows = jax.lax.broadcasted_iota(jnp.int32, (block_rows, LANES), 0)
            d = jnp.where(rows + start_row < total_rows, d, 0.0)

        d2 = d * d
        # Reduce the block onto the resident (acc_rows, 128) output slab:
        # pure elementwise VPU adds with acc_rows/8 independent vreg chains.
        out_ref[...] += jnp.sum(d2.reshape(-1, acc_rows, LANES), axis=0)

    return kernel


def rse_loss(pred, target, reduction="mean", *, max_block_bytes=MAX_BLOCK_BYTES,
             num_partitions=None):
    """sqrt(MSELoss(pred, target)) — matches torch RSELoss forward."""
    assert pred.shape == target.shape, "RSELoss expects matching shapes"
    if reduction not in ("mean", "sum"):
        # TODO(synk): reduction='none' (elementwise sqrt of squared error) is not
        # implemented; the module default ('mean') and 'sum' are.
        raise ValueError(f"unsupported reduction: {reduction}")
    n_elems = math.prod(pred.shape)

    x = jnp.ravel(pred)
    y = jnp.ravel(target)
    if jnp.dtype(x.dtype).itemsize > 4:      # e.g. float64: TPU-unfriendly, upcast-safe
        x = x.astype(jnp.float32)
        y = y.astype(jnp.float32)
    itemsize = jnp.dtype(x.dtype).itemsize

    # Sublane multiple for the input dtype (8 f32, 16 bf16, 32 int8/fp8).
    row_align = SUBLANES * max(1, 4 // itemsize)

    rows_needed = max(1, pl.cdiv(n_elems, LANES))
    # Once there is enough work, keep rows a multiple of the accumulator height
    # so every block splits evenly into acc_rows slabs.
    if rows_needed >= MAX_ACC_ROWS:
        row_align = max(row_align, MAX_ACC_ROWS)
    total_rows = _round_up(rows_needed, row_align)

    # Block size by BYTES (~1 MiB / input / buffer), constant across dtypes.
    cap_rows = max(row_align,
                   (max_block_bytes // (LANES * itemsize)) // row_align * row_align)
    block_rows = min(cap_rows, total_rows)
    steps = pl.cdiv(total_rows, block_rows)
    acc_rows = min(MAX_ACC_ROWS, block_rows)

    # Megacore split only where there are 2 TensorCores (v7x).
    if num_partitions is None:
        num_par = 2 if (_tensorcores_per_chip() >= 2 and steps >= 2) else 1
    else:
        num_par = max(1, int(num_partitions))
    steps_per_par = pl.cdiv(steps, num_par)

    padded_elems = total_rows * LANES
    if padded_elems != n_elems:
        # Tiny pad (< row_align*128 + 128 elements); zeros contribute 0 to SSE.
        x = jnp.pad(x, (0, padded_elems - n_elems))
        y = jnp.pad(y, (0, padded_elems - n_elems))
    x = x.reshape(total_rows, LANES)
    y = y.reshape(total_rows, LANES)

    has_phantom = num_par * steps_per_par > steps        # uneven megacore split
    needs_mask = has_phantom or (total_rows % block_rows != 0)

    last_block = steps - 1
    if has_phantom:
        # Clamp phantom block indices so the DMA stays in bounds; the in-kernel
        # mask (which uses the *unclamped* logical index) zeroes their data.
        in_map = lambda p, i: (jnp.minimum(p * steps_per_par + i, last_block), 0)
    else:
        in_map = lambda p, i: (p * steps_per_par + i, 0)

    kernel = _make_rse_kernel(block_rows, acc_rows, steps_per_par, total_rows,
                              needs_mask)

    partials = pl.pallas_call(
        kernel,
        out_shape=jax.ShapeDtypeStruct((num_par * acc_rows, LANES), jnp.float32),
        grid_spec=pltpu.PrefetchScalarGridSpec(
            num_scalar_prefetch=0,
            grid=(num_par, steps_per_par),
            in_specs=[
                pl.BlockSpec((block_rows, LANES), in_map),
                pl.BlockSpec((block_rows, LANES), in_map),
            ],
            out_specs=pl.BlockSpec((acc_rows, LANES), lambda p, i: (p, 0)),
        ),
        compiler_params=pltpu.CompilerParams(
            dimension_semantics=("parallel", "arbitrary"),
            vmem_limit_bytes=32 << 20,
        ),
    )(x, y)

    # Trivial wrapper glue: final cross-lane reduce, mean, sqrt.
    sse = jnp.sum(partials)
    if reduction == "mean":
        sse = sse / float(n_elems)
    return jnp.sqrt(sse)


if __name__ == "__main__":
    key = jax.random.PRNGKey(0)
    k1, k2, k3, k4, k5, k6 = jax.random.split(key, 6)

    # 1) Small NCHW f32 input (typical regression output), fully aligned.
    shape = (2, 4, 16, 16)
    pred = jax.random.normal(k1, shape, dtype=jnp.float32)
    target = jax.random.normal(k2, shape, dtype=jnp.float32)
    loss = jax.block_until_ready(rse_loss(pred, target, reduction="mean"))
    ref = jnp.sqrt(jnp.mean((pred - target) ** 2))
    assert jnp.allclose(loss, ref, rtol=1e-5, atol=1e-6), (loss, ref)

    # 2) Unaligned element count (tiny pad path) + 'sum' reduction.
    shape2 = (3, 5, 77, 91)
    p2 = jax.random.normal(k3, shape2, dtype=jnp.float32)
    t2 = jax.random.normal(k4, shape2, dtype=jnp.float32)
    loss2 = jax.block_until_ready(rse_loss(p2, t2, reduction="sum"))
    ref2 = jnp.sqrt(jnp.sum((p2 - t2) ** 2))
    assert jnp.allclose(loss2, ref2, rtol=1e-5, atol=1e-6), (loss2, ref2)

    # 3) bf16 input: exercises dtype-scaled block sizing and in-kernel upcast.
    shape3 = (4, 4, 128, 130)
    p3 = jax.random.normal(k5, shape3, dtype=jnp.bfloat16)
    t3 = jax.random.normal(k6, shape3, dtype=jnp.bfloat16)
    loss3 = jax.block_until_ready(rse_loss(p3, t3, reduction="mean"))
    ref3 = jnp.sqrt(
        jnp.mean((p3.astype(jnp.float32) - t3.astype(jnp.float32)) ** 2))
    assert jnp.allclose(loss3, ref3, rtol=1e-3, atol=1e-4), (loss3, ref3)

    # 4) Force a small block cap -> multi-step grid with a ragged last block,
    #    exercising the in-kernel tail mask.
    loss4 = jax.block_until_ready(
        rse_loss(p2, t2, reduction="sum", max_block_bytes=128 * LANES * 4))
    assert jnp.allclose(loss4, ref2, rtol=1e-5, atol=1e-6), (loss4, ref2)

    # 5) Force 2 partitions with an odd step count -> clamped phantom block
    #    (runs serially on 1-TC chips, split across TensorCores on v7x).
    loss5 = jax.block_until_ready(
        rse_loss(p2, t2, reduction="mean", max_block_bytes=128 * LANES * 4,
                 num_partitions=2))
    ref5 = jnp.sqrt(jnp.mean((p2 - t2) ** 2))
    assert jnp.allclose(loss5, ref5, rtol=1e-5, atol=1e-6), (loss5, ref5)

    print("KERNEL_OK")
</pallas_src>

<mosaic_0001>
module attributes {stable_mosaic.version = 11 : i64} {
  func.func @kernel(%arg0: i32, %arg1: i32, %arg2: memref<16x128xf32, #tpu.memory_space<vmem>>, %arg3: memref<16x128xf32, #tpu.memory_space<vmem>>, %arg4: memref<16x128xf32, #tpu.memory_space<vmem>>) attributes {dimension_semantics = [#tpu.dimension_semantics<parallel>, #tpu.dimension_semantics<arbitrary>], iteration_bounds = array<i64: 1, 1>, scalar_prefetch = 0 : i64, scratch_operands = 0 : i64, tpu.core_type = #tpu.core_type<tc>, window_params = [{transform_indices = @transform_0, window_bounds = array<i64: 16, 128>}, {transform_indices = @transform_1, window_bounds = array<i64: 16, 128>}, {transform_indices = @transform_2, window_bounds = array<i64: 16, 128>}]} {
    %c0_i32 = arith.constant 0 : i32
    %0 = arith.cmpi eq, %arg1, %c0_i32 : i32
    %1 = arith.extui %0 : i1 to i32
    %c0_i32_0 = arith.constant 0 : i32
    %2 = arith.cmpi ne, %1, %c0_i32_0 : i32
    scf.if %2 {
      %cst_8 = arith.constant 0.000000e+00 : f32
      %12 = vector.broadcast %cst_8 : f32 to vector<16x128xf32>
      %c0_9 = arith.constant 0 : index
      %c0_10 = arith.constant 0 : index
      %13 = vector.load %arg4[%c0_9, %c0_10] : memref<16x128xf32, #tpu.memory_space<vmem>>, vector<16x128xf32>
      tpu.vector_store %arg4[%c0_9, %c0_10], %12 {strides = array<i32>} : memref<16x128xf32, #tpu.memory_space<vmem>>, vector<16x128xf32>,
    } else {
    }
    %c0 = arith.constant 0 : index
    %c0_1 = arith.constant 0 : index
    %3 = vector.load %arg2[%c0, %c0_1] : memref<16x128xf32, #tpu.memory_space<vmem>>, vector<16x128xf32>
    %c0_2 = arith.constant 0 : index
    %c0_3 = arith.constant 0 : index
    %4 = vector.load %arg3[%c0_2, %c0_3] : memref<16x128xf32, #tpu.memory_space<vmem>>, vector<16x128xf32>
    %5 = arith.subf %3, %4 : vector<16x128xf32>
    %6 = arith.mulf %5, %5 : vector<16x128xf32>
    %c0_4 = arith.constant 0 : index
    %c0_5 = arith.constant 0 : index
    %7 = vector.load %arg4[%c0_4, %c0_5] : memref<16x128xf32, #tpu.memory_space<vmem>>, vector<16x128xf32>
    %8 = vector.shape_cast %6 : vector<16x128xf32> to vector<1x16x128xf32>
    %cst = arith.constant dense<0.000000e+00> : vector<16x128xf32>
    %9 = vector.multi_reduction <add>, %8, %cst [0] : vector<1x16x128xf32> to vector<16x128xf32>
    %10 = arith.addf %7, %9 : vector<16x128xf32>
    %c0_6 = arith.constant 0 : index
    %c0_7 = arith.constant 0 : index
    %11 = vector.load %arg4[%c0_6, %c0_7] : memref<16x128xf32, #tpu.memory_space<vmem>>, vector<16x128xf32>
    tpu.vector_store %arg4[%c0_6, %c0_7], %10 {strides = array<i32>} : memref<16x128xf32, #tpu.memory_space<vmem>>, vector<16x128xf32>,
    return
  }
  func.func @transform_0(%arg0: i32, %arg1: i32) -> (i32, i32) {
    %c1_i32 = arith.constant 1 : i32
    %0 = arith.muli %arg0, %c1_i32 : i32
    %1 = arith.addi %0, %arg1 : i32
    %c0_i32 = arith.constant 0 : i32
    %c0_i32_0 = arith.constant 0 : i32
    return %1, %c0_i32 : i32, i32
  }
  func.func @transform_1(%arg0: i32, %arg1: i32) -> (i32, i32) {
    %c1_i32 = arith.constant 1 : i32
    %0 = arith.muli %arg0, %c1_i32 : i32
    %1 = arith.addi %0, %arg1 : i32
    %c0_i32 = arith.constant 0 : i32
    %c0_i32_0 = arith.constant 0 : i32
    return %1, %c0_i32 : i32, i32
  }
  func.func @transform_2(%arg0: i32, %arg1: i32) -> (i32, i32) {
    %c0_i32 = arith.constant 0 : i32
    %c0_i32_0 = arith.constant 0 : i32
    return %arg0, %c0_i32 : i32, i32
  }
}

</mosaic_0001>

<llo_original>
// kernel: tpu_custom_call.1
$region0: #{tpu_custom_call.1}
  #allocation0 [shape = 'u32[]', space=smem, size = 0x4, offset = 0x4, fixed_abs, tag = 'smem constant byte address 0x4 - core index']
  #allocation1 [shape = 'u32[144,128]{1,0:T(1,128)}', space=vmem, size = 0x12000, scoped, tag = 'internal scratch']
  %s0 = inlined_call_operand.hbm [shape: f32[16,128], index: 0, kind: input, shape index: {}]
  %s1 = inlined_call_operand.hbm [shape: f32[16,128], index: 1, kind: input, shape index: {}]
  %s2 = inlined_call_operand.hbm [shape: f32[16,128], index: 2, kind: output, shape index: {}]
  %s3 = sld [smem:[#allocation0]]
  $region30: #{tpu_custom_call.1} parent=0
    _
  %s5 = ssub.s32 1, %s3
  %s6 = scalar_select 0, %s5, %s3
  $region1: #{tpu_custom_call.1} parent=0
    #allocation2 [shape = 'u8[8192]{0}', space=vmem, size = 0x2000, scoped, tag = 'input window, operand 0, single buffered']
    #allocation3 [shape = 's32[1]{0}', space=sflag, size = 0x4, scoped, tag = 'scoped memory for tpu_custom_call.1']
    #allocation4 [shape = 's32[1]{0}', space=sflag, size = 0x4, scoped, tag = 'scoped memory for tpu_custom_call.1']
    #allocation5 [shape = 'u8[8192]{0}', space=vmem, size = 0x2000, scoped, tag = 'input window, operand 1, single buffered']
    #allocation6 [shape = 's32[1]{0}', space=sflag, size = 0x4, scoped, tag = 'scoped memory for tpu_custom_call.1']
    #allocation7 [shape = 'u8[8192]{0}', space=vmem, size = 0x2000, scoped, tag = 'output window, operand 0, single buffered']
    %7 = vsyncpa [#allocation3], 0
    %8 = vsyncpa [#allocation6], 0
    %9 = vsyncpa [#allocation4], 0
    // Predicated region
    $region2: #{tpu_custom_call.1} parent=1 // pred_check
      _
    $region3: #{tpu_custom_call.1} parent=1 // pred_check_branch
      %11 = sbr.rel (0) target = $region5
    $region4: #{tpu_custom_call.1} parent=1 // pred_region
      %s12 = sadd.s32 0, 0
      %s13 = smul.u32 2, %s12
      %s15 = ssub.s32 256, 256
      %16 = vsyncadd [#allocation3], %s15
      %s17 = smul.addr %s13, 128
      %s18 = scalar_lea.hbm %s0, %s17
      %s19 = sshll.u32 [#allocation2], 4
      %s20 = int_to_ptr.vmem [resolvable:$true] %s19
      %25 = dma.hbm_to_vmem [thread:$0]  %s18, 256, %s20, [#allocation3], 128, 128, 8
    $region5: #{tpu_custom_call.1} parent=1 // pred_fallthru
      _
    // Predicated region
    $region6: #{tpu_custom_call.1} parent=1 // pred_check
      _
    $region7: #{tpu_custom_call.1} parent=1 // pred_check_branch
      %27 = sbr.rel (0) target = $region9
    $region8: #{tpu_custom_call.1} parent=1 // pred_region
      %s28 = sadd.s32 0, 0
      %s29 = smul.u32 2, %s28
      %s31 = ssub.s32 256, 256
      %32 = vsyncadd [#allocation6], %s31
      %s33 = smul.addr %s29, 128
      %s34 = scalar_lea.hbm %s1, %s33
      %s35 = sshll.u32 [#allocation5], 4
      %s36 = int_to_ptr.vmem [resolvable:$true] %s35
      %41 = dma.hbm_to_vmem [thread:$0]  %s34, 256, %s36, [#allocation6], 128, 128, 8
    $region9: #{tpu_custom_call.1} parent=1 // pred_fallthru
      _
    // Predicated region
    $region10: #{tpu_custom_call.1} parent=1 // pred_check
      _
    $region11: #{tpu_custom_call.1} parent=1 // pred_check_branch
      %43 = sbr.rel (0) target = $region13
    $region12: #{tpu_custom_call.1} parent=1 // pred_region
      %44 = dma.done [#allocation3], 256
    $region13: #{tpu_custom_call.1} parent=1 // pred_fallthru
      _
    // Predicated region
    $region14: #{tpu_custom_call.1} parent=1 // pred_check
      _
    $region15: #{tpu_custom_call.1} parent=1 // pred_check_branch
      %46 = sbr.rel (0) target = $region17
    $region16: #{tpu_custom_call.1} parent=1 // pred_region
      %47 = dma.done [#allocation6], 256
    $region17: #{tpu_custom_call.1} parent=1 // pred_fallthru
      _
    %s48 = sadd.s32 0, 0
    %s49 = smul.u32 2, %s48
    %s50 = sadd.s32 0, 0
    %s51 = smul.u32 2, %s50
    %p52 = scmp.eq.s32.totalorder 0, 0
    // Predicated region
    $region18: #{tpu_custom_call.1} parent=1 // pred_check
      %p53 = pneg %p52
    $region19: #{tpu_custom_call.1} parent=1 // pred_check_branch
      %55 = sbr.rel (%p53) target = $region21
    $region20: #{tpu_custom_call.1} parent=1 // pred_region
      %56 = vst [vmem:[#allocation7] sm:$0xff] 0.0
      %57 = vst [vmem:[#allocation7 + $0x8] sm:$0xff] 0.0
    $region21: #{tpu_custom_call.1} parent=1 // pred_fallthru
      _
    %v58 = vld [vmem:[#allocation2] sm:$0xff]
    %v59 = vld [vmem:[#allocation2 + $0x8] sm:$0xff]
    %v60 = vld [vmem:[#allocation5] sm:$0xff]
    %v61 = vld [vmem:[#allocation5 + $0x8] sm:$0xff]
    %v62 = vsub.f32 %v58, %v60
    %v63 = vsub.f32 %v59, %v61
    %v64 = vmul.f32 %v62, %v62
    %v65 = vmul.f32 %v63, %v63
    %v66 = vld [vmem:[#allocation7] sm:$0xff]
    %v67 = vld [vmem:[#allocation7 + $0x8] sm:$0xff]
    %v68 = vadd.f32 %v64, 0.0
    %v69 = vadd.f32 %v65, 0.0
    %v70 = vadd.f32 %v66, %v68
    %v71 = vadd.f32 %v67, %v69
    %72 = vst [vmem:[#allocation7] sm:$0xff] %v70
    %73 = vst [vmem:[#allocation7 + $0x8] sm:$0xff] %v71
    // Predicated region
    $region22: #{tpu_custom_call.1} parent=1 // pred_check
      _
    $region23: #{tpu_custom_call.1} parent=1 // pred_check_branch
      %75 = sbr.rel (0) target = $region25
    $region24: #{tpu_custom_call.1} parent=1 // pred_region
      %s77 = ssub.s32 256, 256
      %78 = vsyncadd [#allocation4], %s77
      %s79 = sshll.u32 [#allocation7], 4
      %s80 = int_to_ptr.vmem [resolvable:$true] %s79
      %85 = dma.vmem_to_hbm [thread:$0]  %s80, 256, %s2, [#allocation4], 128, 128, 8
    $region25: #{tpu_custom_call.1} parent=1 // pred_fallthru
      _
    // Predicated region
    $region26: #{tpu_custom_call.1} parent=1 // pred_check
      _
    $region27: #{tpu_custom_call.1} parent=1 // pred_check_branch
      %87 = sbr.rel (0) target = $region29
    $region28: #{tpu_custom_call.1} parent=1 // pred_region
      %88 = dma.done [#allocation4], 256
    $region29: #{tpu_custom_call.1} parent=1 // pred_fallthru
      _
    %89 = vsyncpa [#allocation3], 1
    %90 = vsyncpa [#allocation6], 1
    %91 = vsyncpa [#allocation4], 1

</llo_original>
